<compile_context>
chip_gen: v5e
topology: v5e:2x2
jax: 0.10.0
libtpu: 0.0.40
codegen_flags: <defaults>
</compile_context>

<pallas_src>
import jax
import jax.numpy as jnp
from jax import lax
from jax.experimental import pallas as pl
from jax.experimental.pallas import tpu as pltpu


def _round_up(a, b):
    return (a + b - 1) // b * b


def _fused_embed_kernel(x_ref, w_ref, add_ref, o_ref):
    # x_ref:   (S, K_pad)      bf16  zero [CLS] row + flattened patches (1 img)
    # w_ref:   (K_pad, N_pad)  bf16  pre-transposed projection weight (resident)
    # add_ref: (S, N_pad)      f32   row 0: cls + pos[0]; rows 1..: bias + pos[s]
    # o_ref:   (S, N_pad)      f32   final embeddings for this image
    acc = jnp.dot(x_ref[...], w_ref[...], preferred_element_type=jnp.float32)
    o_ref[...] = (acc + add_ref[...]).astype(o_ref.dtype)


def embeddings_forward(x, weight, bias, cls_token, position_embeddings,
                       patch_size):
    """Forward pass of the ViT `Embeddings` module (eval mode).

    x: (B, C, H, W); weight: (hidden, C, P, P); bias: (hidden,);
    cls_token: (1, 1, hidden); position_embeddings: (1, num_patches+1, hidden).
    Returns (B, num_patches + 1, hidden).
    """
    B, C, H, W = x.shape
    hidden = weight.shape[0]
    P = patch_size
    Hp, Wp = H // P, W // P
    num_patches = Hp * Wp
    S = num_patches + 1
    K = C * P * P
    K_pad = _round_up(K, 128)      # lane-dense MXU feed (zero-pad is exact)
    N_pad = _round_up(hidden, 128)  # lane-dense output stores

    # ---- im2col in bf16 + [CLS] slot as a zero row (plain JAX glue) ----------
    # TODO(synk): the 6-D reshape/transpose still round-trips the activation
    # through HBM outside the kernel; fusing it in needs an in-kernel relayout
    # Mosaic does not lower cleanly for small P.
    xb = x.astype(jnp.bfloat16)     # cast first: relayout writes half the bytes
    patches = xb.reshape(B, C, Hp, P, Wp, P).transpose(0, 2, 4, 1, 3, 5)
    patches = patches.reshape(B, num_patches, K)
    lhs = jnp.pad(patches, ((0, 0), (1, 0), (0, K_pad - K)))   # (B, S, K_pad)

    # ---- one-time parameter prep (tiny) --------------------------------------
    w_mat = weight.reshape(hidden, K).T                        # (K, hidden)
    w_mat = jnp.pad(w_mat, ((0, K_pad - K), (0, N_pad - hidden)))
    w_mat = w_mat.astype(jnp.bfloat16)                         # bf16 MXU, f32 acc

    pos = position_embeddings.astype(jnp.float32)
    addend = jnp.concatenate(
        [cls_token.astype(jnp.float32) + pos[:, :1, :],
         bias.astype(jnp.float32).reshape(1, 1, hidden) + pos[:, 1:, :]],
        axis=1)                                                # (1, S, hidden)
    addend = jnp.pad(addend, ((0, 0), (0, 0), (0, N_pad - hidden)))
    addend = addend.reshape(S, N_pad)

    cost = pl.CostEstimate(
        flops=2 * B * S * K_pad * N_pad,
        transcendentals=0,
        bytes_accessed=(lhs.size * 2 + w_mat.size * 2
                        + addend.size * 4 + B * S * N_pad * 4))

    # ---- fused kernel: patch matmul + bias + [CLS] + position embeddings -----
    out_pad = pl.pallas_call(
        _fused_embed_kernel,
        out_shape=jax.ShapeDtypeStruct((B, S, N_pad), jnp.float32),
        grid=(B,),
        in_specs=[
            pl.BlockSpec((None, S, K_pad), lambda b: (b, 0, 0)),  # streamed LHS
            pl.BlockSpec((K_pad, N_pad), lambda b: (0, 0)),       # resident W^T
            pl.BlockSpec((S, N_pad), lambda b: (0, 0)),           # resident add
        ],
        out_specs=pl.BlockSpec((None, S, N_pad), lambda b: (b, 0, 0)),
        compiler_params=pltpu.CompilerParams(
            dimension_semantics=("parallel",),        # shard batch across TCs
            vmem_limit_bytes=32 * 1024 * 1024),       # safe on v7x's 64 MiB
        cost_estimate=cost,
    )(lhs, w_mat, addend)

    # Padded N columns are exactly zero (zero-padded W columns and addend).
    out = out_pad[:, :, :hidden] if N_pad > hidden else out_pad
    # TODO(synk): dropout is eval-mode identity here; a training-mode version
    # would draw the mask in-kernel via pltpu.prng_seed / prng_random_bits.
    return out.astype(x.dtype)


def _reference(x, weight, bias, cls_token, position_embeddings, patch_size):
    """Plain-JAX reference mirroring PyTorch Embeddings.forward (eval)."""
    y = lax.conv_general_dilated(
        x, weight,
        window_strides=(patch_size, patch_size),
        padding="VALID",
        dimension_numbers=("NCHW", "OIHW", "NCHW"))
    y = y + bias.reshape(1, -1, 1, 1)
    B, hidden, Hp, Wp = y.shape
    y = y.reshape(B, hidden, Hp * Wp).transpose(0, 2, 1)
    cls = jnp.broadcast_to(cls_token, (B, 1, hidden))
    y = jnp.concatenate([cls, y], axis=1)
    return y + position_embeddings


if __name__ == "__main__":
    # config: image_size=16, patch_size=4, num_channels=4, hidden_size=32
    image_size, patch_size, num_channels, hidden_size = 16, 4, 4, 32
    batch = 2
    num_patches = (image_size // patch_size) ** 2

    key = jax.random.PRNGKey(0)
    kx, kw, kb, kc, kp = jax.random.split(key, 5)
    x = jax.random.normal(kx, (batch, num_channels, image_size, image_size),
                          dtype=jnp.float32)
    weight = jax.random.normal(
        kw, (hidden_size, num_channels, patch_size, patch_size),
        dtype=jnp.float32) * 0.02
    bias = jax.random.normal(kb, (hidden_size,), dtype=jnp.float32) * 0.02
    cls_token = jax.random.normal(kc, (1, 1, hidden_size), dtype=jnp.float32)
    position_embeddings = jax.random.normal(
        kp, (1, num_patches + 1, hidden_size), dtype=jnp.float32)

    out = embeddings_forward(x, weight, bias, cls_token, position_embeddings,
                             patch_size)
    out = jax.block_until_ready(out)

    ref = _reference(x, weight, bias, cls_token, position_embeddings,
                     patch_size)
    assert out.shape == (batch, num_patches + 1, hidden_size)
    # bf16 MXU inputs with f32 accumulation: loosened tolerance vs f32 conv ref.
    assert jnp.allclose(out, ref, atol=2e-2, rtol=2e-2), "mismatch vs reference"

    print("KERNEL_OK")
</pallas_src>

<mosaic_0001>
module attributes {stable_mosaic.version = 11 : i64} {
  func.func @_fused_embed_kernel(%arg0: i32, %arg1: memref<1x17x128xbf16, #tpu.memory_space<vmem>>, %arg2: memref<128x128xbf16, #tpu.memory_space<vmem>>, %arg3: memref<17x128xf32, #tpu.memory_space<vmem>>, %arg4: memref<1x17x128xf32, #tpu.memory_space<vmem>>) attributes {dimension_semantics = [#tpu.dimension_semantics<parallel>], iteration_bounds = array<i64: 2>, scalar_prefetch = 0 : i64, scratch_operands = 0 : i64, tpu.core_type = #tpu.core_type<tc>, window_params = [{transform_indices = @transform_0, window_bounds = array<i64: 1, 17, 128>}, {pipeline_mode = #tpu.pipeline_mode<synchronous>, transform_indices = @transform_1, window_bounds = array<i64: 128, 128>}, {pipeline_mode = #tpu.pipeline_mode<synchronous>, transform_indices = @transform_2, window_bounds = array<i64: 17, 128>}, {transform_indices = @transform_3, window_bounds = array<i64: 1, 17, 128>}]} {
    %c0 = arith.constant 0 : index
    %c0_0 = arith.constant 0 : index
    %c0_1 = arith.constant 0 : index
    %0 = vector.load %arg1[%c0, %c0_0, %c0_1] : memref<1x17x128xbf16, #tpu.memory_space<vmem>>, vector<1x17x128xbf16>
    %1 = vector.shape_cast %0 : vector<1x17x128xbf16> to vector<17x128xbf16>
    %c0_2 = arith.constant 0 : index
    %c0_3 = arith.constant 0 : index
    %2 = vector.load %arg2[%c0_2, %c0_3] : memref<128x128xbf16, #tpu.memory_space<vmem>>, vector<128x128xbf16>
    %cst = arith.constant dense<0.000000e+00> : vector<17x128xf32>
    %3 = tpu.matmul %1, %2, %cst {dimension_numbers = #tpu.dot_dimension_numbers<[1], [0], [0], [1], [0, 0, 1, 1], [], []>} : vector<17x128xbf16>, vector<128x128xbf16>, vector<17x128xf32> -> vector<17x128xf32>
    %c0_4 = arith.constant 0 : index
    %c0_5 = arith.constant 0 : index
    %4 = vector.load %arg3[%c0_4, %c0_5] : memref<17x128xf32, #tpu.memory_space<vmem>>, vector<17x128xf32>
    %5 = arith.addf %3, %4 : vector<17x128xf32>
    %c0_6 = arith.constant 0 : index
    %c0_7 = arith.constant 0 : index
    %c0_8 = arith.constant 0 : index
    %6 = vector.load %arg4[%c0_6, %c0_7, %c0_8] : memref<1x17x128xf32, #tpu.memory_space<vmem>>, vector<1x17x128xf32>
    %7 = vector.shape_cast %6 : vector<1x17x128xf32> to vector<17x128xf32>
    %8 = vector.shape_cast %5 : vector<17x128xf32> to vector<1x17x128xf32>
    tpu.vector_store %arg4[%c0_6, %c0_7, %c0_8], %8 {strides = array<i32>} : memref<1x17x128xf32, #tpu.memory_space<vmem>>, vector<1x17x128xf32>,
    return
  }
  func.func @transform_0(%arg0: i32) -> (i32, i32, i32) {
    %c0_i32 = arith.constant 0 : i32
    %c0_i32_0 = arith.constant 0 : i32
    %c0_i32_1 = arith.constant 0 : i32
    return %arg0, %c0_i32, %c0_i32_0 : i32, i32, i32
  }
  func.func @transform_1(%arg0: i32) -> (i32, i32) {
    %c0_i32 = arith.constant 0 : i32
    %c0_i32_0 = arith.constant 0 : i32
    %c0_i32_1 = arith.constant 0 : i32
    return %c0_i32, %c0_i32_0 : i32, i32
  }
  func.func @transform_2(%arg0: i32) -> (i32, i32) {
    %c0_i32 = arith.constant 0 : i32
    %c0_i32_0 = arith.constant 0 : i32
    %c0_i32_1 = arith.constant 0 : i32
    return %c0_i32, %c0_i32_0 : i32, i32
  }
  func.func @transform_3(%arg0: i32) -> (i32, i32, i32) {
    %c0_i32 = arith.constant 0 : i32
    %c0_i32_0 = arith.constant 0 : i32
    %c0_i32_1 = arith.constant 0 : i32
    return %arg0, %c0_i32, %c0_i32_0 : i32, i32, i32
  }
}

</mosaic_0001>

<llo_original>
// kernel: tpu_custom_call.1
$region0: #{tpu_custom_call.1}
  #allocation0 [shape = 'u32[]', space=smem, size = 0x4, offset = 0x4, fixed_abs, tag = 'smem constant byte address 0x4 - core index']
  #allocation1 [shape = 'u32[72,128]{1,0:T(1,128)}', space=vmem, size = 0x9000, scoped, tag = 'internal scratch']
  %s0 = inlined_call_operand.vmem [shape: bf16[2,17,128], index: 0, kind: input, shape index: {}]
  %s1 = inlined_call_operand.hbm [shape: bf16[128,128], index: 1, kind: input, shape index: {}]
  %s2 = inlined_call_operand.vmem [shape: f32[17,128], index: 2, kind: input, shape index: {}]
  %s3 = inlined_call_operand.vmem [shape: f32[2,17,128], index: 3, kind: output, shape index: {}]
  %s4 = sld [smem:[#allocation0]]
  $region49: #{tpu_custom_call.1} parent=0
    _
  %s6 = ssub.s32 1, %s4
  %s7 = scalar_select 0, %s6, %s4
  $region1: #{tpu_custom_call.1} parent=0
    #allocation2 [shape = 'u8[32768]{0}', space=vmem, size = 0x8000, scoped, tag = 'input window, operand 1, single buffered']
    #allocation3 [shape = 's32[2]{0}', space=sflag, size = 0x8, scoped, tag = 'scoped memory for tpu_custom_call.1']
    %8 = vsyncpa [#allocation3], 0
    loop: start=0, step=1, limit=4
    $region2: #{tpu_custom_call.1} parent=1 // loop_pre_header
      _
    $region3: #{tpu_custom_call.1} parent=1 // loop_header
      %s10 = sphi 0, %s14
      %p11 = scmp.ge.s32.totalorder %s10, 4
      %s20 = sphi 0, %s22
      %s23 = sphi 0, %s20
      %s24 = sphi 0, %s23
      %s40 = sphi 0, %s24
      %s44 = sphi 0, %s44
      %s46 = sphi 0, %s44
      %s47 = sphi 0, %s46
      %s61 = sphi 0, %s47
      %s65 = sphi 0, %s65
      %s67 = sphi 0, %s65
      %s68 = sphi 0, %s67
      %s82 = sphi 0, %s68
      %s88 = sphi 0, %s90
      %s91 = sphi 0, %s88
      %s92 = sphi 0, %s91
      %s108 = sphi 0, %s92
    $region4: #{tpu_custom_call.1} parent=1 // loop_header_branch
      %13 = sbr.rel (%p11) target = $region8
    $region5: #{tpu_custom_call.1} parent=1 // loop_body
      %s15 = ssub.s32 %s10, 1
      %s16 = ssub.s32 %s10, 2
      %s17 = sadd.s32 %s10, 1
      %s18 = ssub.s32 %s10, %s17
      %p19 = scmp.eq.s32.totalorder %s18, 0
      %s21 = sadd.s32 %s20, 1
      %s22 = scalar_select %p19, %s20, %s21
      %p25 = pneg %p19
      %p26 = scmp.eq.s32.totalorder %s10, 1
      %p27 = por %p25, %p26
      %p28 = scmp.ne.s32.totalorder %s20, %s23
      %p29 = scmp.eq.s32.totalorder %s10, 0
      %p30 = por %p28, %p29
      %p31 = scmp.ne.s32.totalorder %s20, %s23
      %p32 = scmp.eq.s32.totalorder %s15, 1
      %p33 = por %p31, %p32
      %p34 = scmp.ne.s32.totalorder %s23, %s24
      %p35 = scmp.eq.s32.totalorder %s15, 0
      %p36 = por %p34, %p35
      %p37 = scmp.ne.s32.totalorder %s23, %s24
      %p38 = scmp.eq.s32.totalorder %s16, 1
      %p39 = por %p37, %p38
      %p41 = scmp.ne.s32.totalorder %s24, %s40
      %p42 = scmp.eq.s32.totalorder %s16, 0
      %p43 = por %p41, %p42
      %s45 = sadd.s32 %s44, 1
      %p48 = scmp.eq.s32.totalorder %s10, 1
      %p49 = scmp.ne.s32.totalorder %s44, %s46
      %p50 = scmp.eq.s32.totalorder %s10, 0
      %p51 = por %p49, %p50
      %p52 = scmp.ne.s32.totalorder %s44, %s46
      %p53 = scmp.eq.s32.totalorder %s15, 1
      %p54 = por %p52, %p53
      %p55 = scmp.ne.s32.totalorder %s46, %s47
      %p56 = scmp.eq.s32.totalorder %s15, 0
      %p57 = por %p55, %p56
      %p58 = scmp.ne.s32.totalorder %s46, %s47
      %p59 = scmp.eq.s32.totalorder %s16, 1
      %p60 = por %p58, %p59
      %p62 = scmp.ne.s32.totalorder %s47, %s61
      %p63 = scmp.eq.s32.totalorder %s16, 0
      %p64 = por %p62, %p63
      %s66 = sadd.s32 %s65, 1
      %p69 = scmp.eq.s32.totalorder %s10, 1
      %p70 = scmp.ne.s32.totalorder %s65, %s67
      %p71 = scmp.eq.s32.totalorder %s10, 0
      %p72 = por %p70, %p71
      %p73 = scmp.ne.s32.totalorder %s65, %s67
      %p74 = scmp.eq.s32.totalorder %s15, 1
      %p75 = por %p73, %p74
      %p76 = scmp.ne.s32.totalorder %s67, %s68
      %p77 = scmp.eq.s32.totalorder %s15, 0
      %p78 = por %p76, %p77
      %p79 = scmp.ne.s32.totalorder %s67, %s68
      %p80 = scmp.eq.s32.totalorder %s16, 1
      %p81 = por %p79, %p80
      %p83 = scmp.ne.s32.totalorder %s68, %s82
      %p84 = scmp.eq.s32.totalorder %s16, 0
      %p85 = por %p83, %p84
      %s86 = ssub.s32 %s10, %s17
      %p87 = scmp.eq.s32.totalorder %s86, 0
      %s89 = sadd.s32 %s88, 1
      %s90 = scalar_select %p87, %s88, %s89
      %p93 = pneg %p87
      %p94 = scmp.eq.s32.totalorder %s10, 1
      %p95 = por %p93, %p94
      %p96 = scmp.ne.s32.totalorder %s88, %s91
      %p97 = scmp.eq.s32.totalorder %s10, 0
      %p98 = por %p96, %p97
      %p99 = scmp.ne.s32.totalorder %s88, %s91
      %p100 = scmp.eq.s32.totalorder %s15, 1
      %p101 = por %p99, %p100
      %p102 = scmp.ne.s32.totalorder %s91, %s92
      %p103 = scmp.eq.s32.totalorder %s15, 0
      %p104 = por %p102, %p103
      %p105 = scmp.ne.s32.totalorder %s91, %s92
      %p106 = scmp.eq.s32.totalorder %s16, 1
      %p107 = por %p105, %p106
      %p109 = scmp.ne.s32.totalorder %s92, %s108
      %p110 = scmp.eq.s32.totalorder %s16, 0
      %p111 = por %p109, %p110
      %p112 = scmp.le.s32.totalorder 1, %s10
      %p113 = scmp.lt.s32.totalorder %s10, 3
      %p114 = pnand %p112, %p113
      %p115 = pneg %p114
      // Predicated region
      $region9: #{tpu_custom_call.1} parent=5 // pred_check
        _
      $region10: #{tpu_custom_call.1} parent=5 // pred_check_branch
        %117 = sbr.rel (%p114) target = $region12
      $region11: #{tpu_custom_call.1} parent=5 // pred_region
        %s118 = ssub.s32 %s10, 1
        // Predicated region
        $region13: #{tpu_custom_call.1} parent=11 // pred_check
          %p119 = pneg %p57
        $region14: #{tpu_custom_call.1} parent=11 // pred_check_branch
          %121 = sbr.rel (%p119) target = $region16
        $region15: #{tpu_custom_call.1} parent=11 // pred_region
          %123 = vsyncadd [#allocation3], 0
          %s124 = sshll.u32 %s1, 4
          %s125 = int_to_ptr.hbm [resolvable:$true] %s124
          %s126 = sshll.u32 [#allocation2], 4
          %s127 = int_to_ptr.vmem [resolvable:$true] %s126
          %132 = dma.hbm_to_vmem [thread:$0]  %s125, 1024, %s127, [#allocation3], 64, 64, 4
        $region16: #{tpu_custom_call.1} parent=11 // pred_fallthru
          _
        // Predicated region
        $region17: #{tpu_custom_call.1} parent=11 // pred_check
          %p133 = pneg %p78
        $region18: #{tpu_custom_call.1} parent=11 // pred_check_branch
          %135 = sbr.rel (%p133) target = $region20
        $region19: #{tpu_custom_call.1} parent=11 // pred_region
          _
        $region20: #{tpu_custom_call.1} parent=11 // pred_fallthru
          _
      $region12: #{tpu_custom_call.1} parent=5 // pred_fallthru
        _
      %p136 = scmp.lt.s32.totalorder %s10, 2
      // Predicated region
      $region21: #{tpu_custom_call.1} parent=5 // pred_check
        %p137 = pneg %p136
      $region22: #{tpu_custom_call.1} parent=5 // pred_check_branch
        %139 = sbr.rel (%p137) target = $region24
      $region23: #{tpu_custom_call.1} parent=5 // pred_region
        // Predicated region
        $region25: #{tpu_custom_call.1} parent=23 // pred_check
          %p140 = pneg %p30
        $region26: #{tpu_custom_call.1} parent=23 // pred_check_branch
          %142 = sbr.rel (%p140) target = $region28
        $region27: #{tpu_custom_call.1} parent=23 // pred_region
          %p143 = scmp.lt.s32.totalorder %s10, 1
          %s144 = scalar_select %p143, %s10, 1
          %s145 = smul.addr %s144, 3
          %s146 = smul.addr %s145, 4
          %s147 = scalar_lea.vmem %s0, %s146
        $region28: #{tpu_custom_call.1} parent=23 // pred_fallthru
          _
      $region24: #{tpu_custom_call.1} parent=5 // pred_fallthru
        _
      %p148 = scmp.le.s32.totalorder 1, %s10
      %p149 = scmp.lt.s32.totalorder %s10, 3
      %p150 = pnand %p148, %p149
      %p151 = pneg %p150
      // Predicated region
      $region29: #{tpu_custom_call.1} parent=5 // pred_check
        _
      $region30: #{tpu_custom_call.1} parent=5 // pred_check_branch
        %153 = sbr.rel (%p150) target = $region32
      $region31: #{tpu_custom_call.1} parent=5 // pred_region
        %s154 = ssub.s32 %s10, 1
        // Predicated region
        $region33: #{tpu_custom_call.1} parent=31 // pred_check
          %p155 = pneg %p57
        $region34: #{tpu_custom_call.1} parent=31 // pred_check_branch
          %157 = sbr.rel (%p155) target = $region36
        $region35: #{tpu_custom_call.1} parent=31 // pred_region
          %159 = dma.done [#allocation3], 1024
        $region36: #{tpu_custom_call.1} parent=31 // pred_fallthru
          _
        %p160 = scmp.lt.s32.totalorder %s15, 1
        %s161 = scalar_select %p160, %s15, 1
        %s162 = smul.addr %s161, 3
        %s163 = smul.addr %s162, 4
        %s164 = scalar_lea.vmem %s0, %s163
        %p165 = pneg %p36
        %p166 = pneg %p33
        %p167 = pneg %p57
        %p168 = pneg %p54
        %p169 = pneg %p78
        %p170 = pneg %p75
        %p171 = pneg %p104
        %p172 = pneg %p101
        %p173 = scmp.lt.s32.totalorder %s15, 1
        %s174 = scalar_select %p173, %s15, 1
        %s175 = smul.addr %s174, 3
        %s176 = smul.addr %s175, 8
        %s177 = scalar_lea.vmem %s3, %s176
        %p178 = scmp.lt.s32.totalorder %s15, 1
        %s179 = scalar_select %p178, %s15, 1
        %s180 = smul.addr %s179, 3
        %s181 = smul.addr %s180, 4
        %s182 = scalar_lea.vmem %s0, %s181
        %p183 = scmp.lt.s32.totalorder %s15, 1
        %s184 = scalar_select %p183, %s15, 1
        %s185 = smul.addr %s184, 3
        %s186 = smul.addr %s185, 8
        %s187 = scalar_lea.vmem %s3, %s186
        %v188 = vld [vmem:[%s182] sm:$0xf]
        %v189 = vld [vmem:[%s182 + $0x4] sm:$0xf]
        %v190 = vld [vmem:[%s182 + $0x8] sm:$0x1]
        %v191 = vld [vmem:[#allocation2] sm:$0xf]
        %v192 = vld [vmem:[#allocation2 + $0x4] sm:$0xf]
        %v193 = vld [vmem:[#allocation2 + $0x8] sm:$0xf]
        %v194 = vld [vmem:[#allocation2 + $0xc] sm:$0xf]
        %v195 = vld [vmem:[#allocation2 + $0x10] sm:$0xf]
        %v196 = vld [vmem:[#allocation2 + $0x14] sm:$0xf]
        %v197 = vld [vmem:[#allocation2 + $0x18] sm:$0xf]
        %v198 = vld [vmem:[#allocation2 + $0x1c] sm:$0xf]
        %v199 = vld [vmem:[#allocation2 + $0x20] sm:$0xf]
        %v200 = vld [vmem:[#allocation2 + $0x24] sm:$0xf]
        %v201 = vld [vmem:[#allocation2 + $0x28] sm:$0xf]
        %v202 = vld [vmem:[#allocation2 + $0x2c] sm:$0xf]
        %v203 = vld [vmem:[#allocation2 + $0x30] sm:$0xf]
        %v204 = vld [vmem:[#allocation2 + $0x34] sm:$0xf]
        %v205 = vld [vmem:[#allocation2 + $0x38] sm:$0xf]
        %v206 = vld [vmem:[#allocation2 + $0x3c] sm:$0xf]
        %v207 = vld [vmem:[%s2] sm:$0xff]
        %v208 = vld [vmem:[%s2 + $0x8] sm:$0xff]
        %v209 = vld [vmem:[%s2 + $0x10] sm:$0x1]
        %v213 = vunpack.c.l.b16 %v188
        %v214 = vunpack.c.l.b16 %v189
        %v215 = vunpack.c.l.b16 %v190
        %v216 = vpack.c.b16 %v214, %v213
        %v217 = vpack.c.b16 %v215, %v215
        %v236 = vunpack.c.l.b16 %v191
        %v237 = vunpack.c.l.b16 %v192
        %v238 = vunpack.c.l.b16 %v193
        %v239 = vunpack.c.l.b16 %v194
        %v240 = vunpack.c.l.b16 %v195
        %v241 = vunpack.c.l.b16 %v196
        %v242 = vunpack.c.l.b16 %v197
        %v243 = vunpack.c.l.b16 %v198
        %v244 = vunpack.c.l.b16 %v199
        %v245 = vunpack.c.l.b16 %v200
        %v246 = vunpack.c.l.b16 %v201
        %v247 = vunpack.c.l.b16 %v202
        %v248 = vunpack.c.l.b16 %v203
        %v249 = vunpack.c.l.b16 %v204
        %v250 = vunpack.c.l.b16 %v205
        %v251 = vunpack.c.l.b16 %v206
        %v252 = vpack.c.b16 %v237, %v236
        %v253 = vpack.c.b16 %v239, %v238
        %v254 = vpack.c.b16 %v241, %v240
        %v255 = vpack.c.b16 %v243, %v242
        %v256 = vpack.c.b16 %v245, %v244
        %v257 = vpack.c.b16 %v247, %v246
        %v258 = vpack.c.b16 %v249, %v248
        %v259 = vpack.c.b16 %v251, %v250
        %268 = vmatpush.bf16.msra.mxu0 %v259
        %269 = vmatpush.bf16.msra.mxu0 %v258
        %270 = vmatpush.bf16.msra.mxu0 %v257
        %271 = vmatpush.bf16.msra.mxu0 %v256
        %272 = vmatpush.bf16.msra.mxu0 %v255
        %273 = vmatpush.bf16.msra.mxu0 %v254
        %274 = vmatpush.bf16.msra.mxu0 %v253
        %275 = vmatpush.bf16.msra.mxu0 %v252
        %276 = vmatmul.bf16.gmra.mxu0 %v216
        %v277 = vpop.f32.mrf.mxu0
        %v278 = vadd.f32 %v207, %v277
        %v279 = vpop.f32.mrf.mxu0
        %v280 = vadd.f32 %v208, %v279
        %281 = vmatmul.bf16.gmra.mxu0 %v217
        %v282 = vpop.f32.mrf.mxu0
        %v283 = vadd.f32 %v209, %v282
        %v284 = vpop.f32.mrf.mxu0
        %285 = vdwg.mxu0
        %286 = vst [vmem:[%s187] sm:$0xff] %v278
        %287 = vst [vmem:[%s187 + $0x8] sm:$0xff] %v280
        %288 = vst [vmem:[%s187 + $0x10] sm:$0x1] %v283
        %p289 = scmp.lt.s32.totalorder %s15, 1
        %s290 = scalar_select %p289, %s15, 1
        %s291 = smul.addr %s290, 3
        %s292 = smul.addr %s291, 8
        %s293 = scalar_lea.vmem %s3, %s292
        // Predicated region
        $region37: #{tpu_custom_call.1} parent=31 // pred_check
          %p294 = pneg %p101
        $region38: #{tpu_custom_call.1} parent=31 // pred_check_branch
          %296 = sbr.rel (%p294) target = $region40
        $region39: #{tpu_custom_call.1} parent=31 // pred_region
          _
        $region40: #{tpu_custom_call.1} parent=31 // pred_fallthru
          _
      $region32: #{tpu_custom_call.1} parent=5 // pred_fallthru
        _
      %p297 = scmp.le.s32.totalorder 2, %s10
      // Predicated region
      $region41: #{tpu_custom_call.1} parent=5 // pred_check
        %p298 = pneg %p297
      $region42: #{tpu_custom_call.1} parent=5 // pred_check_branch
        %300 = sbr.rel (%p298) target = $region44
      $region43: #{tpu_custom_call.1} parent=5 // pred_region
        %s301 = ssub.s32 %s10, 2
        // Predicated region
        $region45: #{tpu_custom_call.1} parent=43 // pred_check
          %p302 = pneg %p107
        $region46: #{tpu_custom_call.1} parent=43 // pred_check_branch
          %304 = sbr.rel (%p302) target = $region48
        $region47: #{tpu_custom_call.1} parent=43 // pred_region
          %p305 = scmp.lt.s32.totalorder %s16, 1
          %s306 = scalar_select %p305, %s16, 1
          %s307 = smul.addr %s306, 3
          %s308 = smul.addr %s307, 8
          %s309 = scalar_lea.vmem %s3, %s308
        $region48: #{tpu_custom_call.1} parent=43 // pred_fallthru
          _
      $region44: #{tpu_custom_call.1} parent=5 // pred_fallthru
        _
    $region6: #{tpu_custom_call.1} parent=1 // loop_footer
      %s14 = sadd.s32 1, %s10
    $region7: #{tpu_custom_call.1} parent=1 // loop_footer_branch
      %9 = sbr.rel target = $region3
    $region8: #{tpu_custom_call.1} parent=1 // loop_exit
      _
    %310 = vsyncpa [#allocation3], 1
    %s311 = scalar_lea.sflag [#allocation3], 1
    %312 = vsyncpa %s311, 1

</llo_original>
